<compile_context>
chip_gen: v6e
topology: v6e:2x2x1
jax: 0.10.0
libtpu: 0.0.40
codegen_flags: <defaults>
</compile_context>

<pallas_src>
import jax
import jax.numpy as jnp
from jax.experimental import pallas as pl
from jax.experimental.pallas import tpu as pltpu


def _pointer_net_loss_kernel(lengths_ref,   # (BB, 1, 1) int32  VMEM block
                             target_ref,    # (BB, T, 1) int32  VMEM block
                             logits_ref,    # (BB, T, S) f32    VMEM block
                             num_ref):      # (1, 1)     f32    resident output (numerator)
    @pl.when(pl.program_id(0) == 0)
    def _():
        num_ref[...] = jnp.zeros_like(num_ref)

    logits = logits_ref[...]                                    # (BB, T, S)
    target = target_ref[...]                                    # (BB, T, 1)
    BB, T, S = logits.shape

    # One-hot gather of p[b, t, target[b, t]] via compare + select (VPU) and a
    # lane reduce (XLU) -- S is tiny, so this hides under the memory stream.
    src_ids = jax.lax.broadcasted_iota(jnp.int32, (BB, T, S), 2)
    picked = jnp.where(src_ids == target, logits, 0.0)          # (BB, T, S)
    gathered = jnp.sum(picked, axis=-1, keepdims=True)          # (BB, T, 1)

    # Sequence mask applied BEFORE the log: padded timesteps and zero-length
    # padded batch rows contribute exactly -log(1) == 0.
    t_ids = jax.lax.broadcasted_iota(jnp.int32, (BB, T, 1), 1)
    valid = t_ids < lengths_ref[...]                            # (BB, T, 1)
    losses = -jnp.log(jnp.where(valid, gathered, 1.0))          # (BB, T, 1)

    # Vector-path accumulation into the resident VMEM output block.
    num_ref[...] += jnp.sum(losses)


def pointer_net_loss(target, logits, lengths, *, block_bytes=2 * 1024 * 1024):
    """target: (B, T) int; logits: (B, T, S) float probs; lengths: (B, 1) int."""
    B, T = target.shape
    S = logits.shape[-1]

    # --- Batch block size: aim for ~block_bytes of logits per grid step.
    bytes_per_row = T * S * 4
    rows = max(1, block_bytes // bytes_per_row)
    if rows >= B:
        bb = B                            # one block covers the whole batch
    else:
        bb = max(8, (rows // 8) * 8)      # keep tiled sublane dim a multiple of 8
    b_pad = pl.cdiv(B, bb) * bb
    num_blocks = b_pad // bb

    # Layout plumbing only (no extra memory pass at these sizes).
    target3d = target.astype(jnp.int32).reshape(B, T, 1)
    lengths3d = lengths.astype(jnp.int32).reshape(B, 1, 1)
    logits_f32 = logits.astype(jnp.float32)
    if b_pad != B:
        pad = b_pad - B
        target3d = jnp.pad(target3d, ((0, pad), (0, 0), (0, 0)))
        lengths3d = jnp.pad(lengths3d, ((0, pad), (0, 0), (0, 0)))  # length 0 -> fully masked
        logits_f32 = jnp.pad(logits_f32, ((0, pad), (0, 0), (0, 0)))

    cost = pl.CostEstimate(
        flops=3 * b_pad * T * S,                                  # compare + select + reduce
        transcendentals=b_pad * T,                                # one log per (b, t)
        bytes_accessed=b_pad * T * S * 4 + b_pad * T * 4 + b_pad * 4 + 4,
    )

    # Raise scoped VMEM only if the double-buffered working set needs it
    # (v5e default is 16 MiB); cap well under v7x's 64 MiB physical VMEM.
    block_vmem = 2 * (bb * T * S * 4 + bb * T * 4 + bb * 4)
    vmem_limit = None
    if block_vmem > 12 * 1024 * 1024:
        vmem_limit = min(block_vmem + (4 << 20), 56 * 1024 * 1024)

    num = pl.pallas_call(
        _pointer_net_loss_kernel,
        out_shape=jax.ShapeDtypeStruct((1, 1), jnp.float32),
        grid_spec=pltpu.PrefetchScalarGridSpec(
            num_scalar_prefetch=0,
            grid=(num_blocks,),
            in_specs=[
                pl.BlockSpec((bb, 1, 1), lambda i: (i, 0, 0)),
                pl.BlockSpec((bb, T, 1), lambda i: (i, 0, 0)),
                pl.BlockSpec((bb, T, S), lambda i: (i, 0, 0)),
            ],
            out_specs=pl.BlockSpec((1, 1), lambda i: (0, 0)),
        ),
        compiler_params=pltpu.CompilerParams(
            dimension_semantics=("arbitrary",),   # batch axis carries the accumulator
            vmem_limit_bytes=vmem_limit,
        ),
        cost_estimate=cost,
    )(lengths3d, target3d, logits_f32)

    # Denominator computed once in the wrapper (lengths already tiny); final
    # divide outside the kernel.
    denom = jnp.sum(lengths.astype(jnp.float32))
    return num[0, 0] / denom


def pointer_net_loss_ref(target, logits, lengths):
    """Pure-JAX reference mirroring the PyTorch forward."""
    B, T = target.shape
    log_logits = jnp.log(logits)
    gathered = jnp.take_along_axis(log_logits, target[:, :, None], axis=-1)[..., 0]
    losses = -gathered
    mask = (jnp.arange(T)[None, :] < lengths).astype(jnp.float32)
    return jnp.sum(losses * mask) / jnp.sum(lengths.astype(jnp.float32))


if __name__ == "__main__":
    key = jax.random.PRNGKey(0)
    B, T, S = 2, 12, 11  # batch, tgt_max_len, src_max_len (as in the module docstring)

    k1, k2, k3 = jax.random.split(key, 3)
    # logits are probabilities (pointer-network output of a softmax)
    raw = jax.random.normal(k1, (B, T, S), dtype=jnp.float32)
    logits = jax.nn.softmax(raw, axis=-1)
    target = jax.random.randint(k2, (B, T), 0, S, dtype=jnp.int32)
    lengths = jax.random.randint(k3, (B, 1), 1, T + 1, dtype=jnp.int32)

    loss = pointer_net_loss(target, logits, lengths)
    jax.block_until_ready(loss)

    ref = pointer_net_loss_ref(target, logits, lengths)
    assert jnp.allclose(loss, ref, rtol=1e-5, atol=1e-5), (loss, ref)

    print("KERNEL_OK")
</pallas_src>

<mosaic_0001>
module attributes {stable_mosaic.version = 11 : i64} {
  func.func @_pointer_net_loss_kernel(%arg0: i32, %arg1: memref<2x1x1xi32, #tpu.memory_space<vmem>>, %arg2: memref<2x12x1xi32, #tpu.memory_space<vmem>>, %arg3: memref<2x12x11xf32, #tpu.memory_space<vmem>>, %arg4: memref<1x1xf32, #tpu.memory_space<vmem>>) attributes {dimension_semantics = [#tpu.dimension_semantics<arbitrary>], iteration_bounds = array<i64: 1>, scalar_prefetch = 0 : i64, scratch_operands = 0 : i64, tpu.core_type = #tpu.core_type<tc>, window_params = [{transform_indices = @transform_0, window_bounds = array<i64: 2, 1, 1>}, {transform_indices = @transform_1, window_bounds = array<i64: 2, 12, 1>}, {transform_indices = @transform_2, window_bounds = array<i64: 2, 12, 11>}, {pipeline_mode = #tpu.pipeline_mode<synchronous>, transform_indices = @transform_3, window_bounds = array<i64: 1, 1>}]} {
    %c0_i32 = arith.constant 0 : i32
    %0 = arith.cmpi eq, %arg0, %c0_i32 : i32
    %1 = arith.extui %0 : i1 to i32
    %c0_i32_0 = arith.constant 0 : i32
    %2 = arith.cmpi ne, %1, %c0_i32_0 : i32
    scf.if %2 {
      %cst_17 = arith.constant 0.000000e+00 : f32
      %29 = vector.broadcast %cst_17 : f32 to vector<1x1xf32>
      %c0_18 = arith.constant 0 : index
      %c0_19 = arith.constant 0 : index
      %30 = vector.load %arg4[%c0_18, %c0_19] : memref<1x1xf32, #tpu.memory_space<vmem>>, vector<1x1xf32>
      tpu.vector_store %arg4[%c0_18, %c0_19], %29 {strides = array<i32>} : memref<1x1xf32, #tpu.memory_space<vmem>>, vector<1x1xf32>,
    } else {
    }
    %c0 = arith.constant 0 : index
    %c0_1 = arith.constant 0 : index
    %c0_2 = arith.constant 0 : index
    %3 = vector.load %arg3[%c0, %c0_1, %c0_2] : memref<2x12x11xf32, #tpu.memory_space<vmem>>, vector<2x12x11xf32>
    %c0_3 = arith.constant 0 : index
    %c0_4 = arith.constant 0 : index
    %c0_5 = arith.constant 0 : index
    %4 = vector.load %arg2[%c0_3, %c0_4, %c0_5] : memref<2x12x1xi32, #tpu.memory_space<vmem>>, vector<2x12x1xi32>
    %5 = tpu.iota {dimensions = array<i32: 2>} : vector<2x12x11xi32>
    %6 = vector.broadcast %4 : vector<2x12x1xi32> to vector<2x12x11xi32>
    %7 = arith.cmpi eq, %5, %6 : vector<2x12x11xi32>
    %cst = arith.constant 0.000000e+00 : f32
    %8 = vector.broadcast %cst : f32 to vector<2x12x11xf32>
    %9 = arith.select %7, %3, %8 : vector<2x12x11xi1>, vector<2x12x11xf32>
    %cst_6 = arith.constant dense<0.000000e+00> : vector<2x12xf32>
    %10 = vector.multi_reduction <add>, %9, %cst_6 [2] : vector<2x12x11xf32> to vector<2x12xf32>
    %11 = vector.shape_cast %10 : vector<2x12xf32> to vector<2x12x1xf32>
    %12 = tpu.iota {dimensions = array<i32: 1>} : vector<2x12x1xi32>
    %c0_7 = arith.constant 0 : index
    %c0_8 = arith.constant 0 : index
    %c0_9 = arith.constant 0 : index
    %13 = vector.load %arg1[%c0_7, %c0_8, %c0_9] : memref<2x1x1xi32, #tpu.memory_space<vmem>>, vector<2x1x1xi32>
    %14 = vector.broadcast %13 : vector<2x1x1xi32> to vector<2x12x1xi32>
    %15 = arith.cmpi slt, %12, %14 : vector<2x12x1xi32>
    %cst_10 = arith.constant 1.000000e+00 : f32
    %16 = vector.broadcast %cst_10 : f32 to vector<2x12x1xf32>
    %17 = arith.select %15, %11, %16 : vector<2x12x1xi1>, vector<2x12x1xf32>
    %18 = math.log %17 : vector<2x12x1xf32>
    %cst_11 = arith.constant 0.000000e+00 : f32
    %19 = vector.broadcast %cst_11 : f32 to vector<2x12x1xf32>
    %20 = arith.subf %19, %18 : vector<2x12x1xf32>
    %c0_12 = arith.constant 0 : index
    %c0_13 = arith.constant 0 : index
    %21 = vector.load %arg4[%c0_12, %c0_13] : memref<1x1xf32, #tpu.memory_space<vmem>>, vector<1x1xf32>
    %22 = vector.shape_cast %20 : vector<2x12x1xf32> to vector<1x2x12x1xf32>
    %cst_14 = arith.constant dense<0.000000e+00> : vector<1xf32>
    %23 = vector.multi_reduction <add>, %22, %cst_14 [1, 2, 3] : vector<1x2x12x1xf32> to vector<1xf32>
    %24 = vector.shape_cast %23 : vector<1xf32> to vector<1x1x1x1xf32>
    %25 = vector.extract %24[0, 0, 0, 0] : f32 from vector<1x1x1x1xf32>
    %26 = vector.broadcast %25 : f32 to vector<1x1xf32>
    %27 = arith.addf %21, %26 : vector<1x1xf32>
    %c0_15 = arith.constant 0 : index
    %c0_16 = arith.constant 0 : index
    %28 = vector.load %arg4[%c0_15, %c0_16] : memref<1x1xf32, #tpu.memory_space<vmem>>, vector<1x1xf32>
    tpu.vector_store %arg4[%c0_15, %c0_16], %27 {strides = array<i32>} : memref<1x1xf32, #tpu.memory_space<vmem>>, vector<1x1xf32>,
    return
  }
  func.func @transform_0(%arg0: i32) -> (i32, i32, i32) {
    %c0_i32 = arith.constant 0 : i32
    %c0_i32_0 = arith.constant 0 : i32
    %c0_i32_1 = arith.constant 0 : i32
    return %arg0, %c0_i32, %c0_i32_0 : i32, i32, i32
  }
  func.func @transform_1(%arg0: i32) -> (i32, i32, i32) {
    %c0_i32 = arith.constant 0 : i32
    %c0_i32_0 = arith.constant 0 : i32
    %c0_i32_1 = arith.constant 0 : i32
    return %arg0, %c0_i32, %c0_i32_0 : i32, i32, i32
  }
  func.func @transform_2(%arg0: i32) -> (i32, i32, i32) {
    %c0_i32 = arith.constant 0 : i32
    %c0_i32_0 = arith.constant 0 : i32
    %c0_i32_1 = arith.constant 0 : i32
    return %arg0, %c0_i32, %c0_i32_0 : i32, i32, i32
  }
  func.func @transform_3(%arg0: i32) -> (i32, i32) {
    %c0_i32 = arith.constant 0 : i32
    %c0_i32_0 = arith.constant 0 : i32
    %c0_i32_1 = arith.constant 0 : i32
    return %c0_i32, %c0_i32_0 : i32, i32
  }
}

</mosaic_0001>

<llo_original>
// kernel: tpu_custom_call.1
$region0: #{tpu_custom_call.1}
  #allocation0 [shape = 'u32[]', space=smem, size = 0x4, offset = 0x4, fixed_abs, tag = 'smem constant byte address 0x4 - core index']
  #allocation1 [shape = 'u32[144,128]{1,0:T(1,128)}', space=vmem, size = 0x12000, scoped, tag = 'internal scratch']
  %s0 = inlined_call_operand.vmem [shape: s32[2,1,1], index: 0, kind: input, shape index: {}]
  %s1 = inlined_call_operand.vmem [shape: s32[2,12,1], index: 1, kind: input, shape index: {}]
  %s2 = inlined_call_operand.vmem [shape: f32[2,12,11], index: 2, kind: input, shape index: {}]
  %s3 = inlined_call_operand.hbm [shape: f32[1,1], index: 3, kind: output, shape index: {}]
  %s4 = sld [smem:[#allocation0]]
  $region26: #{tpu_custom_call.1} parent=0
    _
  %s6 = ssub.s32 1, %s4
  %s7 = scalar_select 0, %s6, %s4
  $region1: #{tpu_custom_call.1} parent=0
    #allocation2 [shape = 'u8[512]{0}', space=vmem, size = 0x400, scoped, tag = 'output window, operand 0, single buffered']
    #allocation3 [shape = 's32[1]{0}', space=sflag, size = 0x4, scoped, tag = 'scoped memory for tpu_custom_call.1']
    %8 = vsyncpa [#allocation3], 0
    // Predicated region
    $region2: #{tpu_custom_call.1} parent=1 // pred_check
      _
    $region3: #{tpu_custom_call.1} parent=1 // pred_check_branch
      %10 = sbr.rel (0) target = $region5
    $region4: #{tpu_custom_call.1} parent=1 // pred_region
      _
    $region5: #{tpu_custom_call.1} parent=1 // pred_fallthru
      _
    // Predicated region
    $region6: #{tpu_custom_call.1} parent=1 // pred_check
      _
    $region7: #{tpu_custom_call.1} parent=1 // pred_check_branch
      %12 = sbr.rel (0) target = $region9
    $region8: #{tpu_custom_call.1} parent=1 // pred_region
      _
    $region9: #{tpu_custom_call.1} parent=1 // pred_fallthru
      _
    // Predicated region
    $region10: #{tpu_custom_call.1} parent=1 // pred_check
      _
    $region11: #{tpu_custom_call.1} parent=1 // pred_check_branch
      %14 = sbr.rel (0) target = $region13
    $region12: #{tpu_custom_call.1} parent=1 // pred_region
      _
    $region13: #{tpu_custom_call.1} parent=1 // pred_fallthru
      _
    %p15 = scmp.eq.s32.totalorder 0, 0
    // Predicated region
    $region14: #{tpu_custom_call.1} parent=1 // pred_check
      %p16 = pneg %p15
    $region15: #{tpu_custom_call.1} parent=1 // pred_check_branch
      %18 = sbr.rel (%p16) target = $region17
    $region16: #{tpu_custom_call.1} parent=1 // pred_region
      %vm19 = vcmask 0
      %20 = vst.msk [vmem:[#allocation2] sm:$0x1] %vm19, 0.0
    $region17: #{tpu_custom_call.1} parent=1 // pred_fallthru
      _
    %v21 = vld [vmem:[%s2] sm:$0xff]
    %v22 = vld [vmem:[%s2 + $0x8] sm:$0xf]
    %v23 = vld [vmem:[%s2 + $0x10] sm:$0xff]
    %v24 = vld [vmem:[%s2 + $0x18] sm:$0xf]
    %v25 = vld [vmem:[%s1] sm:$0xff]
    %v26 = vld [vmem:[%s1 + $0x8] sm:$0xf]
    %v27 = vld [vmem:[%s1 + $0x10] sm:$0xff]
    %v28 = vld [vmem:[%s1 + $0x18] sm:$0xf]
    %v29 = vlaneseq
    %v30 = vand.u32 %v29, 127
    %31 = vset.pattern.permute.xlu0 0
    %32 = vperm.xlu0 %31, %v25
    %v33 = vpop.permute.xlu0 %32
    %34 = vset.pattern.permute.xlu0 0
    %35 = vperm.xlu0 %34, %v26
    %v36 = vpop.permute.xlu0 %35
    %37 = vset.pattern.permute.xlu0 0
    %38 = vperm.xlu0 %37, %v27
    %v39 = vpop.permute.xlu0 %38
    %40 = vset.pattern.permute.xlu0 0
    %41 = vperm.xlu0 %40, %v28
    %v42 = vpop.permute.xlu0 %41
    %vm43 = vcmp.eq.s32.totalorder %v30, %v33
    %vm44 = vcmp.eq.s32.totalorder %v30, %v36
    %vm45 = vcmp.eq.s32.totalorder %v30, %v39
    %vm46 = vcmp.eq.s32.totalorder %v30, %v42
    %v47 = vsel %vm43, %v21, 0.0
    %v48 = vsel %vm44, %v22, 0.0
    %v49 = vsel %vm45, %v23, 0.0
    %v50 = vsel %vm46, %v24, 0.0
    %vm51 = vcmask 89088
    %v52 = vsel %vm51, %v47, 0.0
    %53 = vadd.xlane.f32.xlu0 %v52
    %v54 = vpop.xlane.xlu0 %53
    %vm55 = vcmask 84992
    %v56 = vsel %vm55, %v48, 0.0
    %57 = vadd.xlane.f32.xlu0 %v56
    %v58 = vpop.xlane.xlu0 %57
    %v59 = vsel %vm51, %v49, 0.0
    %60 = vadd.xlane.f32.xlu0 %v59
    %v61 = vpop.xlane.xlu0 %60
    %v62 = vsel %vm55, %v50, 0.0
    %63 = vadd.xlane.f32.xlu0 %v62
    %v64 = vpop.xlane.xlu0 %63
    %v65 = vlaneseq
    %v66 = vshrl.u32 %v65, 7
    %v67 = vadd.s32 %v66, 8
    %v68 = vld [vmem:[%s0] sm:$0x1]
    %v69 = vld [vmem:[%s0 + $0x1] sm:$0x1]
    %v70 = vlaneseq
    %v71 = vshrl.u32 %v70, 7
    %v72 = vsub.s32 0, %v71
    %v73 = vrot.slane %v68, %v72
    %v74 = vlaneseq
    %v75 = vshrl.u32 %v74, 7
    %v76 = vsub.s32 0, %v75
    %v77 = vrot.slane %v69, %v76
    %vm78 = vcmp.lt.s32.totalorder %v66, %v73
    %vm79 = vcmp.lt.s32.totalorder %v67, %v73
    %vm80 = vcmp.lt.s32.totalorder %v66, %v77
    %vm81 = vcmp.lt.s32.totalorder %v67, %v77
    %v82 = vsel %vm78, %v54, 1.0
    %v83 = vsel %vm79, %v58, 1.0
    %v84 = vsel %vm80, %v61, 1.0
    %v85 = vsel %vm81, %v64, 1.0
    %v86 = vlog2.pop %v82
    %v87 = vmul.f32 %v86, 0.6931472
    %v88 = vlog2.pop %v83
    %v89 = vmul.f32 %v88, 0.6931472
    %v90 = vlog2.pop %v84
    %v91 = vmul.f32 %v90, 0.6931472
    %v92 = vlog2.pop %v85
    %v93 = vmul.f32 %v92, 0.6931472
    %v94 = vsub.f32 0.0, %v87
    %v95 = vsub.f32 0.0, %v89
    %v96 = vsub.f32 0.0, %v91
    %v97 = vsub.f32 0.0, %v93
    %v98 = vld [vmem:[#allocation2] sm:$0x1]
    %vm99 = vcmask 7168
    %v100 = vsel %vm99, %v94, 0.0
    %vm101 = vcmask 3072
    %v102 = vsel %vm101, %v95, 0.0
    %v103 = vadd.f32 %v100, %v102
    %v104 = vsel %vm99, %v96, 0.0
    %v105 = vadd.f32 %v103, %v104
    %v106 = vsel %vm101, %v97, 0.0
    %v107 = vadd.f32 %v105, %v106
    %108 = vadd.xlane.f32.xlu0 %v107
    %v109 = vpop.xlane.xlu0 %108
    %v110 = vrot.slane %v109, 4
    %v111 = vadd.f32 %v109, %v110
    %v112 = vrot.slane %v111, 2
    %v113 = vadd.f32 %v111, %v112
    %v114 = vrot.slane %v113, 1
    %v115 = vadd.f32 %v113, %v114
    %s116 = vtos %v115
    %v117 = vstv %s116
    %v118 = vadd.f32 %v98, %v117
    %vm119 = vcmask 0
    %120 = vst.msk [vmem:[#allocation2] sm:$0x1] %vm119, %v118
    // Predicated region
    $region18: #{tpu_custom_call.1} parent=1 // pred_check
      _
    $region19: #{tpu_custom_call.1} parent=1 // pred_check_branch
      %122 = sbr.rel (0) target = $region21
    $region20: #{tpu_custom_call.1} parent=1 // pred_region
      %s124 = ssub.s32 16, 16
      %125 = vsyncadd [#allocation3], %s124
      %s127 = sshll.u32 [#allocation2], 4
      %s128 = int_to_ptr.vmem [resolvable:$true] %s127
      %130 = dma.vmem_to_hbm [thread:$0]  %s128, 16, %s3, [#allocation3]
    $region21: #{tpu_custom_call.1} parent=1 // pred_fallthru
      _
    // Predicated region
    $region22: #{tpu_custom_call.1} parent=1 // pred_check
      _
    $region23: #{tpu_custom_call.1} parent=1 // pred_check_branch
      %132 = sbr.rel (0) target = $region25
    $region24: #{tpu_custom_call.1} parent=1 // pred_region
      %133 = dma.done [#allocation3], 16
    $region25: #{tpu_custom_call.1} parent=1 // pred_fallthru
      _
    %134 = vsyncpa [#allocation3], 1

</llo_original>
